<compile_context>
chip_gen: v5e
topology: v5e:2x2
jax: 0.10.0
libtpu: 0.0.40
codegen_flags: <defaults>
</compile_context>

<pallas_src>
import functools

import jax
import jax.numpy as jnp
from jax.experimental import pallas as pl
from jax.experimental.pallas import tpu as pltpu


def _round_up(x, m):
    return (x + m - 1) // m * m


# ----------------------------------------------------------------------------
# Kernel
# ----------------------------------------------------------------------------
def _exode_kernel(layer_meta, compute_dtype,
                  t_ref, betas_ref, y_ref, wpack_ref, wt_ref, b_ref, out_ref):
    """Feature-major MLP tile: activations are [features, tb], batch on lanes.

    layer_meta : static tuple of (row_offset, dout, din) per layer.
    t_ref      : SMEM (1,) current ODE time.
    betas_ref  : SMEM (max(L-1,1),) learnable swish betas.
    wpack_ref  : [R, C] stacked transposed layer weights (W_l = wx_l.T), compute_dtype.
    wt_ref     : [R, 1] stacked time-column weights (f32).
    b_ref      : [R, 1] stacked biases (f32).
    """
    num_layers = len(layer_meta)
    t = t_ref[0]
    x = y_ref[...]                                            # [din_0, tb]

    for l, (ro, dout, din) in enumerate(layer_meta):
        w = wpack_ref[ro:ro + dout, 0:din]                    # static slice (free)
        b_eff = t * wt_ref[ro:ro + dout, :] + b_ref[ro:ro + dout, :]   # [dout,1] VPU
        h = jnp.dot(w, x.astype(compute_dtype),
                    preferred_element_type=jnp.float32) + b_eff         # [dout, tb]
        if l < num_layers - 1:
            beta = betas_ref[l]                               # scalar from SMEM
            h = h * jax.nn.sigmoid(beta * h)                  # swish (f32, lane-dense)
        x = h

    out_ref[...] = x.astype(out_ref.dtype)


# ----------------------------------------------------------------------------
# Parameter packing
# ----------------------------------------------------------------------------
def pack_params(params, compute_dtype=jnp.float32):
    """Pack per-layer (wx [din,dout], wt [1,dout], b [1,dout]) into stacked buffers.

    Weights are stored transposed (W_l = wx_l.T -> [dout, din]) and pre-cast to
    compute_dtype so the kernel computes h = W @ X with the batch on the lane
    axis and no per-layer casts. Row offsets are sublane-tile aligned.
    Returns (wpack [R,C], wtpack [R,1], bpack [R,1], layer_meta).
    """
    itemsize = jnp.dtype(compute_dtype).itemsize
    row_align = 8 * max(1, 4 // itemsize)          # 8 for f32, 16 for bf16
    douts = [wx.shape[1] for (wx, _, _) in params]
    dins = [wx.shape[0] for (wx, _, _) in params]
    row_offs, r = [], 0
    for dout in douts:
        row_offs.append(r)
        r += _round_up(dout, row_align)
    R = max(_round_up(r, row_align), row_align)
    C = _round_up(max(dins), 128)

    wpack = jnp.zeros((R, C), compute_dtype)
    wtpack = jnp.zeros((R, 1), jnp.float32)
    bpack = jnp.zeros((R, 1), jnp.float32)
    meta = []
    for (wx, wt, b), ro, dout, din in zip(params, row_offs, douts, dins):
        wpack = wpack.at[ro:ro + dout, 0:din].set(
            jnp.asarray(wx, jnp.float32).T.astype(compute_dtype))
        wtpack = wtpack.at[ro:ro + dout, 0].set(jnp.asarray(wt, jnp.float32)[0])
        bpack = bpack.at[ro:ro + dout, 0].set(jnp.asarray(b, jnp.float32)[0])
        meta.append((ro, int(dout), int(din)))
    return wpack, wtpack, bpack, tuple(meta)


# ----------------------------------------------------------------------------
# Wrappers
# ----------------------------------------------------------------------------
_VMEM_TILE_BUDGET = 24 * 1024 * 1024   # conservative across v5e / v6e / v7x


def extended_odenet_forward_fm(t, y_fm, packed, betas, tb=8192,
                               compute_dtype=jnp.float32):
    """Feature-major forward: y_fm [F_in, B] -> [F_out, B].

    This is the entry point to use inside an ODE solve: keep the state
    feature-major across the whole integration (transpose once outside the
    integrator), so each RHS evaluation is a single pallas_call with no
    transpose / pad / bias-prep XLA ops.
    """
    wpack, wtpack, bpack, layer_meta = packed
    din_total, B = y_fm.shape
    d_out_total = layer_meta[-1][1]
    widest = max(din_total, max(d for _, d, _ in layer_meta))
    io_itemsize = jnp.dtype(y_fm.dtype).itemsize
    w_bytes = (wpack.size * jnp.dtype(wpack.dtype).itemsize
               + (wtpack.size + bpack.size) * 4)

    def footprint(tbv):
        io = 2 * tbv * (din_total + d_out_total) * io_itemsize   # double-buffered tiles
        inter = 4 * widest * tbv * 4                              # live f32 intermediates
        return io + inter + 2 * w_bytes

    # Lane-dense tile (multiple of 128). Keep grid_n >= 2 when B allows (both
    # v7x TensorCores via the 'parallel' axis); cap so the footprint fits the
    # cross-generation VMEM budget.
    tb_eff = max(128, min(int(tb), _round_up(-(-B // 2), 128)) // 128 * 128)
    while tb_eff > 128 and footprint(tb_eff) > _VMEM_TILE_BUDGET:
        tb_eff -= 128
    grid_n = pl.cdiv(B, tb_eff)
    vmem_limit = int(min(max(2 * footprint(tb_eff), 32 * 1024 * 1024),
                         48 * 1024 * 1024))

    # Scalars ride in SMEM; b_eff = t*w_t + b is computed in-kernel.
    t_smem = jnp.full((1,), t, jnp.float32)
    betas_smem = jnp.asarray(betas, jnp.float32).reshape(-1)
    if betas_smem.shape[0] == 0:                 # single-layer net: no activations
        betas_smem = jnp.zeros((1,), jnp.float32)

    kernel = functools.partial(_exode_kernel, layer_meta, compute_dtype)
    out_fm = pl.pallas_call(
        kernel,
        out_shape=jax.ShapeDtypeStruct((d_out_total, B), y_fm.dtype),
        grid=(grid_n,),
        in_specs=[
            pl.BlockSpec(memory_space=pltpu.SMEM),                 # t
            pl.BlockSpec(memory_space=pltpu.SMEM),                 # betas
            pl.BlockSpec((din_total, tb_eff), lambda i: (0, i)),   # y tile (lanes=batch)
            pl.BlockSpec(wpack.shape, lambda i: (0, 0)),           # packed weights
            pl.BlockSpec(wtpack.shape, lambda i: (0, 0)),          # time columns
            pl.BlockSpec(bpack.shape, lambda i: (0, 0)),           # biases
        ],
        out_specs=pl.BlockSpec((d_out_total, tb_eff), lambda i: (0, i)),
        compiler_params=pltpu.CompilerParams(
            dimension_semantics=("parallel",),
            vmem_limit_bytes=vmem_limit),
    )(t_smem, betas_smem, y_fm, wpack, wtpack, bpack)
    return out_fm


def extended_odenet_forward(t, y, packed, betas, tb=8192,
                            compute_dtype=jnp.float32):
    """Batch-major convenience wrapper: y [B, D+P] -> [B, D+P].

    For ODE solves, hoist the transposes outside the integrator and call
    extended_odenet_forward_fm on a feature-major state instead.
    """
    out_fm = extended_odenet_forward_fm(t, jnp.transpose(y), packed, betas,
                                        tb=tb, compute_dtype=compute_dtype)
    return jnp.transpose(out_fm)


# ----------------------------------------------------------------------------
# Parameter init (PyTorch nn.Linear style) and pure-JAX reference
# ----------------------------------------------------------------------------
def init_params(key, hidden_dims, input_shape, phi_dim, dtype=jnp.float32):
    """Per ConcatLinear: nn.Linear(dim_in + 1, dim_out) on [t, x]."""
    D = input_shape[0]
    P = phi_dim
    dims = (D + P,) + tuple(hidden_dims) + (D,)
    params = []
    n_layers = len(dims) - 1
    for l, (din, dout) in enumerate(zip(dims[:-1], dims[1:])):
        key, k_w, k_b = jax.random.split(key, 3)
        fan_in = din + 1
        bound = 1.0 / float(fan_in) ** 0.5
        w_full = jax.random.uniform(k_w, (fan_in, dout), dtype, -bound, bound)
        b = jax.random.uniform(k_b, (1, dout), dtype, -bound, bound)
        wt = w_full[0:1, :]   # time column
        wx = w_full[1:, :]    # feature columns
        if l == n_layers - 1:
            # Fold torch.cat((dx, zeros(B, P)), dim=1) into zero output columns.
            wx = jnp.pad(wx, ((0, 0), (0, P)))
            wt = jnp.pad(wt, ((0, 0), (0, P)))
            b = jnp.pad(b, ((0, 0), (0, P)))
        params.append((wx, wt, b))
    return params


def reference_forward(t, y, params, betas):
    """Pure-JAX reference of ExtendedODEnet.forward for validation."""
    x = y
    L = len(params)
    for l, (wx, wt, b) in enumerate(params):
        h = x @ wx + t * wt + b
        if l < L - 1:
            h = h * jax.nn.sigmoid(betas[l] * h)
        x = h
    return x


# ----------------------------------------------------------------------------
# Demo / self-check
# ----------------------------------------------------------------------------
if __name__ == "__main__":
    key = jax.random.PRNGKey(0)
    hidden_dims = (32, 32)
    input_shape = (4,)     # D
    phi_dim = 4            # P
    D, P = input_shape[0], phi_dim

    k_param, k_y1, k_y2 = jax.random.split(key, 3)
    params = init_params(k_param, hidden_dims, input_shape, phi_dim)
    packed = pack_params(params)
    betas = jnp.ones((len(params) - 1,), jnp.float32)   # Swish beta init = 1.0
    t = 0.5

    # Small batch: single lane tile, exercises the uneven (overhanging) block.
    y = jax.random.normal(k_y1, (8, D + P), dtype=jnp.float32)
    out = jax.block_until_ready(extended_odenet_forward(t, y, packed, betas))
    ref = reference_forward(jnp.float32(t), y, params, betas)
    assert out.shape == (8, D + P)
    assert jnp.allclose(out, ref, atol=2e-5, rtol=2e-5), "mismatch vs reference (B=8)"
    assert jnp.all(out[:, D:] == 0.0)   # folded torch.cat zero pad is exact

    # Non-multiple batch: >= 2 grid steps on the 'parallel' axis (both v7x TCs),
    # ragged tail handled by Pallas's masked final block (no explicit pad).
    y2 = jax.random.normal(k_y2, (200, D + P), dtype=jnp.float32)
    out2 = jax.block_until_ready(extended_odenet_forward(t, y2, packed, betas))
    ref2 = reference_forward(jnp.float32(t), y2, params, betas)
    assert out2.shape == (200, D + P)
    assert jnp.allclose(out2, ref2, atol=2e-5, rtol=2e-5), "mismatch vs reference (B=200)"
    assert jnp.all(out2[:, D:] == 0.0)

    # Feature-major fast path (what an ODE solver should call each RHS eval).
    out_fm = jax.block_until_ready(
        extended_odenet_forward_fm(t, jnp.transpose(y2), packed, betas))
    assert out_fm.shape == (D + P, 200)
    assert jnp.allclose(jnp.transpose(out_fm), ref2, atol=2e-5, rtol=2e-5), \
        "mismatch vs reference (feature-major path)"

    print("KERNEL_OK")
</pallas_src>

<mosaic_0001>
module attributes {stable_mosaic.version = 11 : i64} {
  func.func @_exode_kernel(%arg0: i32, %arg1: memref<1xf32, #tpu.memory_space<smem>>, %arg2: memref<2xf32, #tpu.memory_space<smem>>, %arg3: memref<8x128xf32, #tpu.memory_space<vmem>>, %arg4: memref<72x128xf32, #tpu.memory_space<vmem>>, %arg5: memref<72x1xf32, #tpu.memory_space<vmem>>, %arg6: memref<72x1xf32, #tpu.memory_space<vmem>>, %arg7: memref<8x128xf32, #tpu.memory_space<vmem>>) attributes {dimension_semantics = [#tpu.dimension_semantics<parallel>], iteration_bounds = array<i64: 1>, scalar_prefetch = 0 : i64, scratch_operands = 0 : i64, tpu.core_type = #tpu.core_type<tc>, window_params = [{transform_indices = @transform_0, window_bounds = array<i64: 1>}, {transform_indices = @transform_1, window_bounds = array<i64: 2>}, {transform_indices = @transform_2, window_bounds = array<i64: 8, 128>}, {pipeline_mode = #tpu.pipeline_mode<synchronous>, transform_indices = @transform_3, window_bounds = array<i64: 72, 128>}, {pipeline_mode = #tpu.pipeline_mode<synchronous>, transform_indices = @transform_4, window_bounds = array<i64: 72, 1>}, {pipeline_mode = #tpu.pipeline_mode<synchronous>, transform_indices = @transform_5, window_bounds = array<i64: 72, 1>}, {transform_indices = @transform_6, window_bounds = array<i64: 8, 128>}]} {
    %c0 = arith.constant 0 : index
    %0 = memref.load %arg1[%c0] : memref<1xf32, #tpu.memory_space<smem>>
    %c0_0 = arith.constant 0 : index
    %c0_1 = arith.constant 0 : index
    %1 = vector.load %arg3[%c0_0, %c0_1] : memref<8x128xf32, #tpu.memory_space<vmem>>, vector<8x128xf32>
    %c0_2 = arith.constant 0 : index
    %c0_3 = arith.constant 0 : index
    %2 = vector.load %arg4[%c0_2, %c0_3] : memref<72x128xf32, #tpu.memory_space<vmem>>, vector<32x8xf32>
    %c0_4 = arith.constant 0 : index
    %c0_5 = arith.constant 0 : index
    %3 = vector.load %arg5[%c0_4, %c0_5] : memref<72x1xf32, #tpu.memory_space<vmem>>, vector<32x1xf32>
    %4 = vector.broadcast %0 : f32 to vector<32x1xf32>
    %5 = arith.mulf %4, %3 : vector<32x1xf32>
    %c0_6 = arith.constant 0 : index
    %c0_7 = arith.constant 0 : index
    %6 = vector.load %arg6[%c0_6, %c0_7] : memref<72x1xf32, #tpu.memory_space<vmem>>, vector<32x1xf32>
    %7 = arith.addf %5, %6 : vector<32x1xf32>
    %cst = arith.constant dense<0.000000e+00> : vector<32x128xf32>
    %8 = tpu.matmul %2, %1, %cst {dimension_numbers = #tpu.dot_dimension_numbers<[1], [0], [0], [1], [0, 0, 1, 1], [], []>} : vector<32x8xf32>, vector<8x128xf32>, vector<32x128xf32> -> vector<32x128xf32>
    %9 = vector.broadcast %7 : vector<32x1xf32> to vector<32x128xf32>
    %10 = arith.addf %8, %9 : vector<32x128xf32>
    %c0_8 = arith.constant 0 : index
    %11 = memref.load %arg2[%c0_8] : memref<2xf32, #tpu.memory_space<smem>>
    %12 = vector.broadcast %11 : f32 to vector<32x128xf32>
    %13 = arith.mulf %12, %10 : vector<32x128xf32>
    %14 = arith.negf %13 : vector<32x128xf32>
    %15 = math.exp %14 : vector<32x128xf32>
    %cst_9 = arith.constant 1.000000e+00 : f32
    %16 = vector.broadcast %cst_9 : f32 to vector<32x128xf32>
    %17 = arith.addf %16, %15 : vector<32x128xf32>
    %18 = arith.divf %16, %17 : vector<32x128xf32>
    %19 = arith.mulf %10, %18 : vector<32x128xf32>
    %c32 = arith.constant 32 : index
    %c0_10 = arith.constant 0 : index
    %20 = vector.load %arg4[%c32, %c0_10] : memref<72x128xf32, #tpu.memory_space<vmem>>, vector<32x32xf32>
    %c32_11 = arith.constant 32 : index
    %c0_12 = arith.constant 0 : index
    %21 = vector.load %arg5[%c32_11, %c0_12] : memref<72x1xf32, #tpu.memory_space<vmem>>, vector<32x1xf32>
    %22 = vector.broadcast %0 : f32 to vector<32x1xf32>
    %23 = arith.mulf %22, %21 : vector<32x1xf32>
    %c32_13 = arith.constant 32 : index
    %c0_14 = arith.constant 0 : index
    %24 = vector.load %arg6[%c32_13, %c0_14] : memref<72x1xf32, #tpu.memory_space<vmem>>, vector<32x1xf32>
    %25 = arith.addf %23, %24 : vector<32x1xf32>
    %cst_15 = arith.constant dense<0.000000e+00> : vector<32x128xf32>
    %26 = tpu.matmul %20, %19, %cst_15 {dimension_numbers = #tpu.dot_dimension_numbers<[1], [0], [0], [1], [0, 0, 1, 1], [], []>} : vector<32x32xf32>, vector<32x128xf32>, vector<32x128xf32> -> vector<32x128xf32>
    %27 = vector.broadcast %25 : vector<32x1xf32> to vector<32x128xf32>
    %28 = arith.addf %26, %27 : vector<32x128xf32>
    %c1 = arith.constant 1 : index
    %29 = memref.load %arg2[%c1] : memref<2xf32, #tpu.memory_space<smem>>
    %30 = vector.broadcast %29 : f32 to vector<32x128xf32>
    %31 = arith.mulf %30, %28 : vector<32x128xf32>
    %32 = arith.negf %31 : vector<32x128xf32>
    %33 = math.exp %32 : vector<32x128xf32>
    %cst_16 = arith.constant 1.000000e+00 : f32
    %34 = vector.broadcast %cst_16 : f32 to vector<32x128xf32>
    %35 = arith.addf %34, %33 : vector<32x128xf32>
    %36 = arith.divf %34, %35 : vector<32x128xf32>
    %37 = arith.mulf %28, %36 : vector<32x128xf32>
    %c64 = arith.constant 64 : index
    %c0_17 = arith.constant 0 : index
    %38 = vector.load %arg4[%c64, %c0_17] : memref<72x128xf32, #tpu.memory_space<vmem>>, vector<8x32xf32>
    %c64_18 = arith.constant 64 : index
    %c0_19 = arith.constant 0 : index
    %39 = vector.load %arg5[%c64_18, %c0_19] : memref<72x1xf32, #tpu.memory_space<vmem>>, vector<8x1xf32>
    %40 = vector.broadcast %0 : f32 to vector<8x1xf32>
    %41 = arith.mulf %40, %39 : vector<8x1xf32>
    %c64_20 = arith.constant 64 : index
    %c0_21 = arith.constant 0 : index
    %42 = vector.load %arg6[%c64_20, %c0_21] : memref<72x1xf32, #tpu.memory_space<vmem>>, vector<8x1xf32>
    %43 = arith.addf %41, %42 : vector<8x1xf32>
    %cst_22 = arith.constant dense<0.000000e+00> : vector<8x128xf32>
    %44 = tpu.matmul %38, %37, %cst_22 {dimension_numbers = #tpu.dot_dimension_numbers<[1], [0], [0], [1], [0, 0, 1, 1], [], []>} : vector<8x32xf32>, vector<32x128xf32>, vector<8x128xf32> -> vector<8x128xf32>
    %45 = vector.broadcast %43 : vector<8x1xf32> to vector<8x128xf32>
    %46 = arith.addf %44, %45 : vector<8x128xf32>
    %c0_23 = arith.constant 0 : index
    %c0_24 = arith.constant 0 : index
    %47 = vector.load %arg7[%c0_23, %c0_24] : memref<8x128xf32, #tpu.memory_space<vmem>>, vector<8x128xf32>
    tpu.vector_store %arg7[%c0_23, %c0_24], %46 {strides = array<i32>} : memref<8x128xf32, #tpu.memory_space<vmem>>, vector<8x128xf32>,
    return
  }
  func.func @transform_0(%arg0: i32) -> i32 {
    %c0_i32 = arith.constant 0 : i32
    %c0_i32_0 = arith.constant 0 : i32
    return %c0_i32 : i32
  }
  func.func @transform_1(%arg0: i32) -> i32 {
    %c0_i32 = arith.constant 0 : i32
    %c0_i32_0 = arith.constant 0 : i32
    return %c0_i32 : i32
  }
  func.func @transform_2(%arg0: i32) -> (i32, i32) {
    %c0_i32 = arith.constant 0 : i32
    %c0_i32_0 = arith.constant 0 : i32
    return %c0_i32, %arg0 : i32, i32
  }
  func.func @transform_3(%arg0: i32) -> (i32, i32) {
    %c0_i32 = arith.constant 0 : i32
    %c0_i32_0 = arith.constant 0 : i32
    %c0_i32_1 = arith.constant 0 : i32
    return %c0_i32, %c0_i32_0 : i32, i32
  }
  func.func @transform_4(%arg0: i32) -> (i32, i32) {
    %c0_i32 = arith.constant 0 : i32
    %c0_i32_0 = arith.constant 0 : i32
    %c0_i32_1 = arith.constant 0 : i32
    return %c0_i32, %c0_i32_0 : i32, i32
  }
  func.func @transform_5(%arg0: i32) -> (i32, i32) {
    %c0_i32 = arith.constant 0 : i32
    %c0_i32_0 = arith.constant 0 : i32
    %c0_i32_1 = arith.constant 0 : i32
    return %c0_i32, %c0_i32_0 : i32, i32
  }
  func.func @transform_6(%arg0: i32) -> (i32, i32) {
    %c0_i32 = arith.constant 0 : i32
    %c0_i32_0 = arith.constant 0 : i32
    return %c0_i32, %arg0 : i32, i32
  }
}

</mosaic_0001>

<llo_original>
// kernel: tpu_custom_call.1
$region0: #{tpu_custom_call.1}
  #allocation0 [shape = 'u32[]', space=smem, size = 0x4, offset = 0x4, fixed_abs, tag = 'smem constant byte address 0x4 - core index']
  #allocation1 [shape = 'u32[72,128]{1,0:T(1,128)}', space=vmem, size = 0x9000, scoped, tag = 'internal scratch']
  #allocation2 [shape = 'f32[1]{0:T(128)S(6)}', space=smem, size = 0x200, scoped, tag = 'scoped memory for tpu_custom_call.1']
  %s0 = inlined_call_operand.<no memory space> [shape: f32[1], index: 0, kind: input, shape index: {}]
  %s1 = inlined_call_operand.vmem [shape: f32[2], index: 1, kind: input, shape index: {}]
  %s2 = inlined_call_operand.vmem [shape: f32[8,8], index: 2, kind: input, shape index: {}]
  %s3 = inlined_call_operand.vmem [shape: f32[72,128], index: 3, kind: input, shape index: {}]
  %s4 = inlined_call_operand.vmem [shape: f32[72,1], index: 4, kind: input, shape index: {}]
  %s5 = inlined_call_operand.vmem [shape: f32[72,1], index: 5, kind: input, shape index: {}]
  %s6 = inlined_call_operand.hbm [shape: f32[8,8], index: 6, kind: output, shape index: {}]
  %s7 = sld [smem:[#allocation0]]
  $region38: #{tpu_custom_call.1} parent=0
    _
  %s9 = ssub.s32 1, %s7
  %s10 = scalar_select 0, %s9, %s7
  %11 = sst [smem:[#allocation2]] %s0
  $region1: #{tpu_custom_call.1} parent=0
    #allocation3 [shape = 'u8[512]{0}', space=smem, size = 0x200, scoped, tag = 'input window, operand 1, single buffered']
    #allocation4 [shape = 's32[1]{0}', space=sflag, size = 0x4, scoped, tag = 'scoped memory for tpu_custom_call.1']
    #allocation5 [shape = 's32[1]{0}', space=sflag, size = 0x4, scoped, tag = 'scoped memory for tpu_custom_call.1']
    #allocation6 [shape = 'u8[4096]{0}', space=vmem, size = 0x1000, scoped, tag = 'output window, operand 0, single buffered']
    %12 = vsyncpa [#allocation5], 0
    %13 = vsyncpa [#allocation4], 0
    // Predicated region
    $region2: #{tpu_custom_call.1} parent=1 // pred_check
      _
    $region3: #{tpu_custom_call.1} parent=1 // pred_check_branch
      %15 = sbr.rel (0) target = $region5
    $region4: #{tpu_custom_call.1} parent=1 // pred_region
      _
    $region5: #{tpu_custom_call.1} parent=1 // pred_fallthru
      _
    // Predicated region
    $region6: #{tpu_custom_call.1} parent=1 // pred_check
      _
    $region7: #{tpu_custom_call.1} parent=1 // pred_check_branch
      %17 = sbr.rel (0) target = $region9
    $region8: #{tpu_custom_call.1} parent=1 // pred_region
      %19 = vsyncadd [#allocation5], 0
      %s21 = sshll.u32 %s1, 4
      %s22 = int_to_ptr.vmem [resolvable:$true] %s21
      %24 = dma.vmem_to_smem %s22, 16, [#allocation3], [#allocation5]
    $region9: #{tpu_custom_call.1} parent=1 // pred_fallthru
      _
    // Predicated region
    $region10: #{tpu_custom_call.1} parent=1 // pred_check
      _
    $region11: #{tpu_custom_call.1} parent=1 // pred_check_branch
      %26 = sbr.rel (0) target = $region13
    $region12: #{tpu_custom_call.1} parent=1 // pred_region
      _
    $region13: #{tpu_custom_call.1} parent=1 // pred_fallthru
      _
    // Predicated region
    $region14: #{tpu_custom_call.1} parent=1 // pred_check
      _
    $region15: #{tpu_custom_call.1} parent=1 // pred_check_branch
      %28 = sbr.rel (0) target = $region17
    $region16: #{tpu_custom_call.1} parent=1 // pred_region
      _
    $region17: #{tpu_custom_call.1} parent=1 // pred_fallthru
      _
    // Predicated region
    $region18: #{tpu_custom_call.1} parent=1 // pred_check
      _
    $region19: #{tpu_custom_call.1} parent=1 // pred_check_branch
      %30 = sbr.rel (0) target = $region21
    $region20: #{tpu_custom_call.1} parent=1 // pred_region
      _
    $region21: #{tpu_custom_call.1} parent=1 // pred_fallthru
      _
    // Predicated region
    $region22: #{tpu_custom_call.1} parent=1 // pred_check
      _
    $region23: #{tpu_custom_call.1} parent=1 // pred_check_branch
      %32 = sbr.rel (0) target = $region25
    $region24: #{tpu_custom_call.1} parent=1 // pred_region
      _
    $region25: #{tpu_custom_call.1} parent=1 // pred_fallthru
      _
    // Predicated region
    $region26: #{tpu_custom_call.1} parent=1 // pred_check
      _
    $region27: #{tpu_custom_call.1} parent=1 // pred_check_branch
      %34 = sbr.rel (0) target = $region29
    $region28: #{tpu_custom_call.1} parent=1 // pred_region
      %36 = dma.done [#allocation5], 16
    $region29: #{tpu_custom_call.1} parent=1 // pred_fallthru
      _
    %37 = sfence
    %s38 = sld [smem:[#allocation2]]
    %v39 = vld [vmem:[%s2] sm:$0xff]
    %v40 = vld [vmem:[%s3] sm:$0xff]
    %v41 = vld [vmem:[%s3 + $0x8] sm:$0xff]
    %v42 = vld [vmem:[%s3 + $0x10] sm:$0xff]
    %v43 = vld [vmem:[%s3 + $0x18] sm:$0xff]
    %v44 = vld [vmem:[%s4] sm:$0xff]
    %v45 = vld [vmem:[%s4 + $0x8] sm:$0xff]
    %v46 = vld [vmem:[%s4 + $0x10] sm:$0xff]
    %v47 = vld [vmem:[%s4 + $0x18] sm:$0xff]
    %v48 = vstv %s38
    %v49 = vmul.f32 %v48, %v44
    %v50 = vmul.f32 %v48, %v45
    %v51 = vmul.f32 %v48, %v46
    %v52 = vmul.f32 %v48, %v47
    %v53 = vld [vmem:[%s5] sm:$0xff]
    %v54 = vld [vmem:[%s5 + $0x8] sm:$0xff]
    %v55 = vld [vmem:[%s5 + $0x10] sm:$0xff]
    %v56 = vld [vmem:[%s5 + $0x18] sm:$0xff]
    %v57 = vadd.f32 %v49, %v53
    %v58 = vadd.f32 %v50, %v54
    %v59 = vadd.f32 %v51, %v55
    %v60 = vadd.f32 %v52, %v56
    %62 = vset.pattern.permute.xlu0 0
    %63 = vperm.xlu0 %62, %v57
    %v64 = vpop.permute.xlu0 %63
    %67 = vset.pattern.permute.xlu0 0
    %68 = vperm.xlu0 %67, %v58
    %v69 = vpop.permute.xlu0 %68
    %72 = vset.pattern.permute.xlu0 0
    %73 = vperm.xlu0 %72, %v59
    %v74 = vpop.permute.xlu0 %73
    %77 = vset.pattern.permute.xlu0 0
    %78 = vperm.xlu0 %77, %v60
    %v79 = vpop.permute.xlu0 %78
    %vm81 = vcmask 64512
    %v83 = vsel %vm81, %v40, 0
    %v86 = vsel %vm81, %v41, 0
    %v89 = vsel %vm81, %v42, 0
    %v92 = vsel %vm81, %v43, 0
    %94 = vmatpush.msra.mxu0 0.0
    %95 = vmatpush.msra.mxu0 0.0
    %96 = vmatpush.msra.mxu0 0.0
    %97 = vmatpush.msra.mxu0 0.0
    %98 = vmatpush.msra.mxu0 0.0
    %99 = vmatpush.msra.mxu0 0.0
    %100 = vmatpush.msra.mxu0 0.0
    %101 = vmatpush.msra.mxu0 0.0
    %102 = vmatpush.msra.mxu0 0.0
    %103 = vmatpush.msra.mxu0 0.0
    %104 = vmatpush.msra.mxu0 0.0
    %105 = vmatpush.msra.mxu0 0.0
    %106 = vmatpush.msra.mxu0 0.0
    %107 = vmatpush.msra.mxu0 0.0
    %108 = vmatpush.msra.mxu0 0.0
    %109 = vmatpush.msra.mxu0 %v39
    %110 = vmatmul.f32.gmra.mxu0 %v83
    %v111 = vpop.f32.mrf.mxu0
    %v112 = vadd.f32 %v64, %v111
    %113 = vmatmul.f32.gmra.mxu0 %v86
    %v114 = vpop.f32.mrf.mxu0
    %v115 = vadd.f32 %v69, %v114
    %116 = vmatmul.f32.gmra.mxu0 %v89
    %v117 = vpop.f32.mrf.mxu0
    %v118 = vadd.f32 %v74, %v117
    %119 = vmatmul.f32.gmra.mxu0 %v92
    %v120 = vpop.f32.mrf.mxu0
    %v121 = vadd.f32 %v79, %v120
    %122 = vdwg.mxu0
    %s123 = sld [smem:[#allocation3]]
    %v124 = vstv %s123
    %v125 = vmul.f32 %v124, %v112
    %v126 = vmul.f32 %v124, %v115
    %v127 = vmul.f32 %v124, %v118
    %v128 = vmul.f32 %v124, %v121
    %v129 = vxor.u32 %v125, 2147483648
    %v130 = vxor.u32 %v126, 2147483648
    %v131 = vxor.u32 %v127, 2147483648
    %v132 = vxor.u32 %v128, 2147483648
    %v133 = vmul.f32 %v129, 1.442695
    %v134 = vpow.pop %v133
    %v135 = vmul.f32 %v130, 1.442695
    %v136 = vpow.pop %v135
    %v137 = vmul.f32 %v131, 1.442695
    %v138 = vpow.pop %v137
    %v139 = vmul.f32 %v132, 1.442695
    %v140 = vpow.pop %v139
    %v141 = vadd.f32 %v134, 1.0
    %v142 = vadd.f32 %v136, 1.0
    %v143 = vadd.f32 %v138, 1.0
    %v144 = vadd.f32 %v140, 1.0
    %v145 = vrcp.pop %v141
    %v146 = vmul.f32 %v141, %v145
    %v147 = vsub.f32 1.0, %v146
    %v148 = vmul.f32 %v145, %v147
    %v149 = vadd.f32 %v145, %v148
    %vm150 = vweird.f32 %v141
    %vm151 = vweird.f32 %v145
    %vm152 = vmor %vm150, %vm151
    %v153 = vsel %vm152, %v145, %v149
    %v154 = vand.u32 2147483647, %v141
    %vm155 = vcmp.eq.f32.partialorder %v154, 8.507059e+37
    %v156 = vand.u32 %v141, 2147483648
    %v157 = vor.u32 1.1754944e-38, %v156
    %v158 = vsel %vm155, %v157, %v153
    %v159 = vmul.f32 1.0, %v158
    %v160 = vrcp.pop %v142
    %v161 = vmul.f32 %v142, %v160
    %v162 = vsub.f32 1.0, %v161
    %v163 = vmul.f32 %v160, %v162
    %v164 = vadd.f32 %v160, %v163
    %vm165 = vweird.f32 %v142
    %vm166 = vweird.f32 %v160
    %vm167 = vmor %vm165, %vm166
    %v168 = vsel %vm167, %v160, %v164
    %v169 = vand.u32 2147483647, %v142
    %vm170 = vcmp.eq.f32.partialorder %v169, 8.507059e+37
    %v171 = vand.u32 %v142, 2147483648
    %v172 = vor.u32 1.1754944e-38, %v171
    %v173 = vsel %vm170, %v172, %v168
    %v174 = vmul.f32 1.0, %v173
    %v175 = vrcp.pop %v143
    %v176 = vmul.f32 %v143, %v175
    %v177 = vsub.f32 1.0, %v176
    %v178 = vmul.f32 %v175, %v177
    %v179 = vadd.f32 %v175, %v178
    %vm180 = vweird.f32 %v143
    %vm181 = vweird.f32 %v175
    %vm182 = vmor %vm180, %vm181
    %v183 = vsel %vm182, %v175, %v179
    %v184 = vand.u32 2147483647, %v143
    %vm185 = vcmp.eq.f32.partialorder %v184, 8.507059e+37
    %v186 = vand.u32 %v143, 2147483648
    %v187 = vor.u32 1.1754944e-38, %v186
    %v188 = vsel %vm185, %v187, %v183
    %v189 = vmul.f32 1.0, %v188
    %v190 = vrcp.pop %v144
    %v191 = vmul.f32 %v144, %v190
    %v192 = vsub.f32 1.0, %v191
    %v193 = vmul.f32 %v190, %v192
    %v194 = vadd.f32 %v190, %v193
    %vm195 = vweird.f32 %v144
    %vm196 = vweird.f32 %v190
    %vm197 = vmor %vm195, %vm196
    %v198 = vsel %vm197, %v190, %v194
    %v199 = vand.u32 2147483647, %v144
    %vm200 = vcmp.eq.f32.partialorder %v199, 8.507059e+37
    %v201 = vand.u32 %v144, 2147483648
    %v202 = vor.u32 1.1754944e-38, %v201
    %v203 = vsel %vm200, %v202, %v198
    %v204 = vmul.f32 1.0, %v203
    %v205 = vmul.f32 %v112, %v159
    %v206 = vmul.f32 %v115, %v174
    %v207 = vmul.f32 %v118, %v189
    %v208 = vmul.f32 %v121, %v204
    %v209 = vld [vmem:[%s3 + $0x20] sm:$0xff]
    %v210 = vld [vmem:[%s3 + $0x28] sm:$0xff]
    %v211 = vld [vmem:[%s3 + $0x30] sm:$0xff]
    %v212 = vld [vmem:[%s3 + $0x38] sm:$0xff]
    %v213 = vld [vmem:[%s4 + $0x20] sm:$0xff]
    %v214 = vld [vmem:[%s4 + $0x28] sm:$0xff]
    %v215 = vld [vmem:[%s4 + $0x30] sm:$0xff]
    %v216 = vld [vmem:[%s4 + $0x38] sm:$0xff]
    %v217 = vmul.f32 %v48, %v213
    %v218 = vmul.f32 %v48, %v214
    %v219 = vmul.f32 %v48, %v215
    %v220 = vmul.f32 %v48, %v216
    %v221 = vld [vmem:[%s5 + $0x20] sm:$0xff]
    %v222 = vld [vmem:[%s5 + $0x28] sm:$0xff]
    %v223 = vld [vmem:[%s5 + $0x30] sm:$0xff]
    %v224 = vld [vmem:[%s5 + $0x38] sm:$0xff]
    %v225 = vadd.f32 %v217, %v221
    %v226 = vadd.f32 %v218, %v222
    %v227 = vadd.f32 %v219, %v223
    %v228 = vadd.f32 %v220, %v224
    %230 = vset.pattern.permute.xlu0 0
    %231 = vperm.xlu0 %230, %v225
    %v232 = vpop.permute.xlu0 %231
    %235 = vset.pattern.permute.xlu0 0
    %236 = vperm.xlu0 %235, %v226
    %v237 = vpop.permute.xlu0 %236
    %240 = vset.pattern.permute.xlu0 0
    %241 = vperm.xlu0 %240, %v227
    %v242 = vpop.permute.xlu0 %241
    %245 = vset.pattern.permute.xlu0 0
    %246 = vperm.xlu0 %245, %v228
    %v247 = vpop.permute.xlu0 %246
    %vm249 = vcmask 261120
    %v251 = vsel %vm249, %v209, 0
    %v254 = vsel %vm249, %v210, 0
    %v257 = vsel %vm249, %v211, 0
    %v260 = vsel %vm249, %v212, 0
    %262 = vmatpush.msra.mxu0 0.0
    %263 = vmatpush.msra.mxu0 0.0
    %264 = vmatpush.msra.mxu0 0.0
    %265 = vmatpush.msra.mxu0 0.0
    %266 = vmatpush.msra.mxu0 0.0
    %267 = vmatpush.msra.mxu0 0.0
    %268 = vmatpush.msra.mxu0 0.0
    %269 = vmatpush.msra.mxu0 0.0
    %270 = vmatpush.msra.mxu0 0.0
    %271 = vmatpush.msra.mxu0 0.0
    %272 = vmatpush.msra.mxu0 0.0
    %273 = vmatpush.msra.mxu0 0.0
    %274 = vmatpush.msra.mxu0 %v208
    %275 = vmatpush.msra.mxu0 %v207
    %276 = vmatpush.msra.mxu0 %v206
    %277 = vmatpush.msra.mxu0 %v205
    %278 = vmatmul.f32.gmra.mxu0 %v251
    %v279 = vpop.f32.mrf.mxu0
    %v280 = vadd.f32 %v232, %v279
    %281 = vmatmul.f32.gmra.mxu0 %v254
    %v282 = vpop.f32.mrf.mxu0
    %v283 = vadd.f32 %v237, %v282
    %284 = vmatmul.f32.gmra.mxu0 %v257
    %v285 = vpop.f32.mrf.mxu0
    %v286 = vadd.f32 %v242, %v285
    %287 = vmatmul.f32.gmra.mxu0 %v260
    %v288 = vpop.f32.mrf.mxu0
    %v289 = vadd.f32 %v247, %v288
    %290 = vdwg.mxu0
    %s291 = sld [smem:[#allocation3 + $0x1]]
    %v292 = vstv %s291
    %v293 = vmul.f32 %v292, %v280
    %v294 = vmul.f32 %v292, %v283
    %v295 = vmul.f32 %v292, %v286
    %v296 = vmul.f32 %v292, %v289
    %v297 = vxor.u32 %v293, 2147483648
    %v298 = vxor.u32 %v294, 2147483648
    %v299 = vxor.u32 %v295, 2147483648
    %v300 = vxor.u32 %v296, 2147483648
    %v301 = vmul.f32 %v297, 1.442695
    %v302 = vpow.pop %v301
    %v303 = vmul.f32 %v298, 1.442695
    %v304 = vpow.pop %v303
    %v305 = vmul.f32 %v299, 1.442695
    %v306 = vpow.pop %v305
    %v307 = vmul.f32 %v300, 1.442695
    %v308 = vpow.pop %v307
    %v309 = vadd.f32 %v302, 1.0
    %v310 = vadd.f32 %v304, 1.0
    %v311 = vadd.f32 %v306, 1.0
    %v312 = vadd.f32 %v308, 1.0
    %v313 = vrcp.pop %v309
    %v314 = vmul.f32 %v309, %v313
    %v315 = vsub.f32 1.0, %v314
    %v316 = vmul.f32 %v313, %v315
    %v317 = vadd.f32 %v313, %v316
    %vm318 = vweird.f32 %v309
    %vm319 = vweird.f32 %v313
    %vm320 = vmor %vm318, %vm319
    %v321 = vsel %vm320, %v313, %v317
    %v322 = vand.u32 2147483647, %v309
    %vm323 = vcmp.eq.f32.partialorder %v322, 8.507059e+37
    %v324 = vand.u32 %v309, 2147483648
    %v325 = vor.u32 1.1754944e-38, %v324
    %v326 = vsel %vm323, %v325, %v321
    %v327 = vmul.f32 1.0, %v326
    %v328 = vrcp.pop %v310
    %v329 = vmul.f32 %v310, %v328
    %v330 = vsub.f32 1.0, %v329
    %v331 = vmul.f32 %v328, %v330
    %v332 = vadd.f32 %v328, %v331
    %vm333 = vweird.f32 %v310
    %vm334 = vweird.f32 %v328
    %vm335 = vmor %vm333, %vm334
    %v336 = vsel %vm335, %v328, %v332
    %v337 = vand.u32 2147483647, %v310
    %vm338 = vcmp.eq.f32.partialorder %v337, 8.507059e+37
    %v339 = vand.u32 %v310, 2147483648
    %v340 = vor.u32 1.1754944e-38, %v339
    %v341 = vsel %vm338, %v340, %v336
    %v342 = vmul.f32 1.0, %v341
    %v343 = vrcp.pop %v311
    %v344 = vmul.f32 %v311, %v343
    %v345 = vsub.f32 1.0, %v344
    %v346 = vmul.f32 %v343, %v345
    %v347 = vadd.f32 %v343, %v346
    %vm348 = vweird.f32 %v311
    %vm349 = vweird.f32 %v343
    %vm350 = vmor %vm348, %vm349
    %v351 = vsel %vm350, %v343, %v347
    %v352 = vand.u32 2147483647, %v311
    %vm353 = vcmp.eq.f32.partialorder %v352, 8.507059e+37
    %v354 = vand.u32 %v311, 2147483648
    %v355 = vor.u32 1.1754944e-38, %v354
    %v356 = vsel %vm353, %v355, %v351
    %v357 = vmul.f32 1.0, %v356
    %v358 = vrcp.pop %v312
    %v359 = vmul.f32 %v312, %v358
    %v360 = vsub.f32 1.0, %v359
    %v361 = vmul.f32 %v358, %v360
    %v362 = vadd.f32 %v358, %v361
    %vm363 = vweird.f32 %v312
    %vm364 = vweird.f32 %v358
    %vm365 = vmor %vm363, %vm364
    %v366 = vsel %vm365, %v358, %v362
    %v367 = vand.u32 2147483647, %v312
    %vm368 = vcmp.eq.f32.partialorder %v367, 8.507059e+37
    %v369 = vand.u32 %v312, 2147483648
    %v370 = vor.u32 1.1754944e-38, %v369
    %v371 = vsel %vm368, %v370, %v366
    %v372 = vmul.f32 1.0, %v371
    %v373 = vmul.f32 %v280, %v327
    %v374 = vmul.f32 %v283, %v342
    %v375 = vmul.f32 %v286, %v357
    %v376 = vmul.f32 %v289, %v372
    %v377 = vld [vmem:[%s3 + $0x40] sm:$0xff]
    %v378 = vld [vmem:[%s4 + $0x40] sm:$0xff]
    %v379 = vmul.f32 %v48, %v378
    %v380 = vld [vmem:[%s5 + $0x40] sm:$0xff]
    %v381 = vadd.f32 %v379, %v380
    %383 = vset.pattern.permute.xlu0 0
    %384 = vperm.xlu0 %383, %v381
    %v385 = vpop.permute.xlu0 %384
    %v388 = vsel %vm249, %v377, 0
    %390 = vmatpush.msra.mxu0 0.0
    %391 = vmatpush.msra.mxu0 0.0
    %392 = vmatpush.msra.mxu0 0.0
    %393 = vmatpush.msra.mxu0 0.0
    %394 = vmatpush.msra.mxu0 0.0
    %395 = vmatpush.msra.mxu0 0.0
    %396 = vmatpush.msra.mxu0 0.0
    %397 = vmatpush.msra.mxu0 0.0
    %398 = vmatpush.msra.mxu0 0.0
    %399 = vmatpush.msra.mxu0 0.0
    %400 = vmatpush.msra.mxu0 0.0
    %401 = vmatpush.msra.mxu0 0.0
    %402 = vmatpush.msra.mxu0 %v376
    %403 = vmatpush.msra.mxu0 %v375
    %404 = vmatpush.msra.mxu0 %v374
    %405 = vmatpush.msra.mxu0 %v373
    %406 = vmatmul.f32.gmra.mxu0 %v388
    %v407 = vpop.f32.mrf.mxu0
    %v408 = vadd.f32 %v385, %v407
    %409 = vdwg.mxu0
    %410 = vst [vmem:[#allocation6] sm:$0xff] %v408
    // Predicated region
    $region30: #{tpu_custom_call.1} parent=1 // pred_check
      _
    $region31: #{tpu_custom_call.1} parent=1 // pred_check_branch
      %412 = sbr.rel (0) target = $region33
    $region32: #{tpu_custom_call.1} parent=1 // pred_region
      %414 = vsyncadd [#allocation4], 0
      %s416 = sshll.u32 [#allocation6], 4
      %s417 = int_to_ptr.vmem [resolvable:$true] %s416
      %s418 = sshll.u32 %s6, 4
      %s419 = int_to_ptr.hbm [resolvable:$true] %s418
      %421 = dma.vmem_to_hbm [thread:$0]  %s417, 128, %s419, [#allocation4]
    $region33: #{tpu_custom_call.1} parent=1 // pred_fallthru
      _
    // Predicated region
    $region34: #{tpu_custom_call.1} parent=1 // pred_check
      _
    $region35: #{tpu_custom_call.1} parent=1 // pred_check_branch
      %423 = sbr.rel (0) target = $region37
    $region36: #{tpu_custom_call.1} parent=1 // pred_region
      %425 = dma.done [#allocation4], 128
    $region37: #{tpu_custom_call.1} parent=1 // pred_fallthru
      _
    %426 = vsyncpa [#allocation4], 1
    %427 = vsyncpa [#allocation5], 1

</llo_original>
